<compile_context>
chip_gen: v7x
topology: tpu7x:2x2x1
jax: 0.10.0
libtpu: 0.0.40
codegen_flags: <defaults>
</compile_context>

<pallas_src>
import jax
import jax.numpy as jnp
from jax.experimental import pallas as pl
from jax.experimental.pallas import tpu as pltpu


# ----------------------------- sizing helpers ------------------------------

def _tpu_vmem_capacity_bytes():
    try:
        return int(pltpu.get_tpu_info().vmem_capacity_bytes)
    except Exception:
        return 64 << 20  # conservative fallback (v7x per-core size)


def _block_vmem_budget_bytes():
    # Budget for the double-buffered blocks: stay well inside scoped VMEM on
    # every generation (v7x: 64 MiB physical -> 16 MiB; v5e/v6e: 24 MiB).
    return min(24 << 20, _tpu_vmem_capacity_bytes() // 4)


def _vmem_limit_bytes():
    # Raise the scoped-VMEM limit explicitly (v5e default is only 16 MiB),
    # but keep comfortable headroom under physical capacity.
    return min(64 << 20, _tpu_vmem_capacity_bytes() // 2)


def _pick_group(n, c, itemsize):
    """Images packed per block so the sublane dim g*C fills the vreg
    (8 rows for 4-byte, 16 for 2-byte dtypes).  g must divide N."""
    min_sub = max(8, 32 // itemsize)
    if c >= min_sub or n <= 1:
        return 1
    want = -(-min_sub // c)  # ceil(min_sub / c)
    divisors = [d for d in range(1, n + 1) if n % d == 0]
    at_least = [d for d in divisors if d >= want]
    if at_least:
        return min(at_least)
    return max(d for d in divisors if d <= want)


def _pick_tm(hw, cp, itemsize, n_groups):
    """Lane-dense spatial tile: as large as fits the generation-aware VMEM
    budget, a multiple of 128, and split so the grid has >= 2 blocks."""
    budget = _block_vmem_budget_bytes()
    tm_max = max(128, budget // (6 * cp * itemsize))  # 2 in + 1 out, x2 buffers
    if hw <= 128:
        return hw  # single (possibly ragged) block; can't do better
    tm = min((tm_max // 128) * 128, (hw // 128) * 128, 8192)
    if n_groups * pl.cdiv(hw, tm) < 2:
        # Keep both v7x TensorCores busy (harmless on single-TC v5e/v6e).
        tm = max(128, 128 * ((hw // 128) // 2))
    return tm


# --------------------------------- kernel ----------------------------------

def _make_mod_kernel(use_fma):
    """Channel-mix kernel over one (CP, TM) tile.

    x0_ref, x1_ref : (CP, TM) activation tiles (packed channels on sublanes,
                     spatial on lanes).
    w0_ref, w1_ref : (CP, CP) droppath-scaled (block-diagonal) 1x1 weights.
    o_ref          : (CP, TM) output tile.
    """

    def kernel(x0_ref, x1_ref, w0_ref, w1_ref, o_ref):
        if use_fma:
            # Truly tiny unpacked C: an MXU contraction would be almost all
            # padding; do 2*CP unrolled broadcast-FMAs on the VPU.  Slice the
            # refs per channel (streams row tiles, low vreg pressure) and
            # start the accumulator from the first product.  Math stays f32
            # (v5e's VPU has no bf16) even when I/O is bf16.
            cp = x0_ref.shape[0]
            w0 = w0_ref[...].astype(jnp.float32)
            w1 = w1_ref[...].astype(jnp.float32)
            acc = w0[:, 0:1] * x0_ref[0:1, :].astype(jnp.float32)
            acc = acc + w1[:, 0:1] * x1_ref[0:1, :].astype(jnp.float32)
            for ci in range(1, cp):
                acc = acc + w0[:, ci:ci + 1] * x0_ref[ci:ci + 1, :].astype(jnp.float32)
                acc = acc + w1[:, ci:ci + 1] * x1_ref[ci:ci + 1, :].astype(jnp.float32)
        else:
            # MXU path: bf16 x bf16 -> f32 accumulate is native on v6e/v7x.
            # TODO(synk): when the caller can provide a pre-stacked [x0; x1]
            # input, the two dots fuse into one 2*CP contraction (halves the
            # vmatmul count on v5e/v6e; v7x's MRB already accumulates the
            # second dot in place).
            acc = jnp.dot(w0_ref[...], x0_ref[...],
                          preferred_element_type=jnp.float32)
            acc = acc + jnp.dot(w1_ref[...], x1_ref[...],
                                preferred_element_type=jnp.float32)
        o_ref[...] = acc.astype(o_ref.dtype)

    return kernel


def _mod_pallas(x0, x1, w0, w1, *, use_fma):
    """x0, x1: (NG, CP, HW) packed activations; w0, w1: (CP, CP) weights."""
    ng, cp, hw = x0.shape
    itemsize = jnp.dtype(x0.dtype).itemsize
    tm = _pick_tm(hw, cp, itemsize, ng)
    grid = (ng, pl.cdiv(hw, tm))

    x_spec = pl.BlockSpec((None, cp, tm), lambda b, m: (b, 0, m))
    w_spec = pl.BlockSpec((cp, cp), lambda b, m: (0, 0))  # resident weights

    return pl.pallas_call(
        _make_mod_kernel(use_fma),
        out_shape=jax.ShapeDtypeStruct((ng, cp, hw), x0.dtype),
        grid_spec=pltpu.PrefetchScalarGridSpec(
            num_scalar_prefetch=0,
            grid=grid,
            in_specs=[x_spec, x_spec, w_spec, w_spec],
            out_specs=pl.BlockSpec((None, cp, tm), lambda b, m: (b, 0, m)),
        ),
        compiler_params=pltpu.CompilerParams(
            dimension_semantics=("parallel", "parallel"),
            vmem_limit_bytes=_vmem_limit_bytes(),
        ),
    )(x0, x1, w0, w1)


# ------------------------------ module classes ------------------------------

class SyntheticMod:
    """Representative `mod`: fused 1x1 convs on s0, s1 + droppath scale."""

    def __init__(self, channels, key):
        k0, k1 = jax.random.split(key)
        # 1x1 conv weights stored as (out_ch, in_ch) for the W @ X formulation.
        self.w0 = (jax.random.normal(k0, (channels, channels), jnp.float32)
                   / jnp.sqrt(channels))
        self.w1 = (jax.random.normal(k1, (channels, channels), jnp.float32)
                   / jnp.sqrt(channels))

    def __call__(self, s0, s1, droppath):
        n, c, h, w = s0.shape
        hw = h * w
        dt = s0.dtype
        itemsize = jnp.dtype(dt).itemsize

        # (N, C, H*W) is a free reshape (channels on sublane, spatial on lane);
        # pack g images per block so the sublane dim g*C fills the vreg.
        g = _pick_group(n, c, itemsize)
        x0 = s0.reshape(n // g, g * c, hw)
        x1 = s1.reshape(n // g, g * c, hw)

        # Fold the droppath scale into the (tiny) weights, replicate them
        # block-diagonally for the packed groups, and cast to the activation
        # dtype so the MXU path is native bf16 when activations are bf16.
        w0d = (self.w0 * droppath).astype(dt)
        w1d = (self.w1 * droppath).astype(dt)
        if g > 1:
            eye = jnp.eye(g, dtype=dt)
            w0d = jnp.kron(eye, w0d)
            w1d = jnp.kron(eye, w1d)

        # VPU fallback only for the truly tiny unpacked case; everything else
        # (including packed tiny C) uses the MXU.
        use_fma = (g == 1) and (c <= (16 if itemsize <= 2 else 8))

        out = _mod_pallas(x0, x1, w0d, w1d, use_fma=use_fma)
        return out.reshape(n, c, h, w)


class DropChannel:
    """JAX mirror of the PyTorch DropChannel wrapper."""

    def __init__(self, p, mod):
        self.mod = mod
        self.p = p  # stored but unused in forward, exactly as in PyTorch

    def __call__(self, s0, s1, droppath):
        ret = self.mod(s0, s1, droppath)
        return ret


# --------------------------------- reference --------------------------------

def _mod_reference(s0, s1, w0, w1, droppath):
    """Exact-f32 broadcast-sum reference mirroring the wrapper's numerics
    (droppath folded into weights, weights rounded to the I/O dtype)."""
    dt = s0.dtype
    w0d = (w0 * droppath).astype(dt).astype(jnp.float32)
    w1d = (w1 * droppath).astype(dt).astype(jnp.float32)
    x0 = s0.astype(jnp.float32)
    x1 = s1.astype(jnp.float32)
    r0 = (w0d[None, :, :, None, None] * x0[:, None, :, :, :]).sum(axis=2)
    r1 = (w1d[None, :, :, None, None] * x1[:, None, :, :, :]).sum(axis=2)
    return r0 + r1


# ----------------------------------- demo -----------------------------------

if __name__ == "__main__":
    key = jax.random.PRNGKey(0)
    k_s0, k_s1, k_w = jax.random.split(key, 3)
    droppath = 0.8

    C, H, W = 4, 16, 16
    mod = SyntheticMod(C, k_w)
    drop_channel = DropChannel(p=0.2, mod=mod)

    # (batch, io dtype, max-abs tolerance):
    #  1) bf16, N=4 -> packed g=4 (16 sublanes), bf16 MXU path (primary).
    #  2) f32,  N=2 -> packed g=2 (8 sublanes),  f32 MXU path.
    #  3) f32,  N=1 -> unpacked tiny-C VPU broadcast-FMA path.
    configs = [
        (4, jnp.bfloat16, 4e-2),
        (2, jnp.float32, 5e-2),   # loose: covers any internal f32-matmul pass choice
        (1, jnp.float32, 1e-4),
    ]

    for n, dt, tol in configs:
        s0 = jax.random.normal(k_s0, (n, C, H, W), jnp.float32).astype(dt)
        s1 = jax.random.normal(k_s1, (n, C, H, W), jnp.float32).astype(dt)

        out = drop_channel(s0, s1, droppath)
        out = jax.block_until_ready(out)

        ref = _mod_reference(s0, s1, mod.w0, mod.w1, droppath)
        assert out.shape == (n, C, H, W)
        assert out.dtype == dt
        err = float(jnp.max(jnp.abs(out.astype(jnp.float32) - ref)))
        assert err <= tol, (n, str(dt), err)

    print("KERNEL_OK")
</pallas_src>

<mosaic_0001>
module attributes {stable_mosaic.version = 11 : i64} {
  func.func @kernel(%arg0: i32, %arg1: i32, %arg2: memref<1x16x128xbf16, #tpu.memory_space<vmem>>, %arg3: memref<1x16x128xbf16, #tpu.memory_space<vmem>>, %arg4: memref<16x16xbf16, #tpu.memory_space<vmem>>, %arg5: memref<16x16xbf16, #tpu.memory_space<vmem>>, %arg6: memref<1x16x128xbf16, #tpu.memory_space<vmem>>) attributes {dimension_semantics = [#tpu.dimension_semantics<parallel>, #tpu.dimension_semantics<parallel>], iteration_bounds = array<i64: 1, 2>, scalar_prefetch = 0 : i64, scratch_operands = 0 : i64, tpu.core_type = #tpu.core_type<tc>, window_params = [{transform_indices = @transform_0, window_bounds = array<i64: 1, 16, 128>}, {transform_indices = @transform_1, window_bounds = array<i64: 1, 16, 128>}, {pipeline_mode = #tpu.pipeline_mode<synchronous>, transform_indices = @transform_2, window_bounds = array<i64: 16, 16>}, {pipeline_mode = #tpu.pipeline_mode<synchronous>, transform_indices = @transform_3, window_bounds = array<i64: 16, 16>}, {transform_indices = @transform_4, window_bounds = array<i64: 1, 16, 128>}]} {
    %c0 = arith.constant 0 : index
    %c0_0 = arith.constant 0 : index
    %0 = vector.load %arg4[%c0, %c0_0] : memref<16x16xbf16, #tpu.memory_space<vmem>>, vector<16x16xbf16>
    %c0_1 = arith.constant 0 : index
    %c0_2 = arith.constant 0 : index
    %c0_3 = arith.constant 0 : index
    %1 = vector.load %arg2[%c0_1, %c0_2, %c0_3] : memref<1x16x128xbf16, #tpu.memory_space<vmem>>, vector<1x16x128xbf16>
    %2 = vector.shape_cast %1 : vector<1x16x128xbf16> to vector<16x128xbf16>
    %cst = arith.constant dense<0.000000e+00> : vector<16x128xf32>
    %3 = tpu.matmul %0, %2, %cst {dimension_numbers = #tpu.dot_dimension_numbers<[1], [0], [0], [1], [0, 0, 1, 1], [], []>} : vector<16x16xbf16>, vector<16x128xbf16>, vector<16x128xf32> -> vector<16x128xf32>
    %c0_4 = arith.constant 0 : index
    %c0_5 = arith.constant 0 : index
    %4 = vector.load %arg5[%c0_4, %c0_5] : memref<16x16xbf16, #tpu.memory_space<vmem>>, vector<16x16xbf16>
    %c0_6 = arith.constant 0 : index
    %c0_7 = arith.constant 0 : index
    %c0_8 = arith.constant 0 : index
    %5 = vector.load %arg3[%c0_6, %c0_7, %c0_8] : memref<1x16x128xbf16, #tpu.memory_space<vmem>>, vector<1x16x128xbf16>
    %6 = vector.shape_cast %5 : vector<1x16x128xbf16> to vector<16x128xbf16>
    %cst_9 = arith.constant dense<0.000000e+00> : vector<16x128xf32>
    %7 = tpu.matmul %4, %6, %cst_9 {dimension_numbers = #tpu.dot_dimension_numbers<[1], [0], [0], [1], [0, 0, 1, 1], [], []>} : vector<16x16xbf16>, vector<16x128xbf16>, vector<16x128xf32> -> vector<16x128xf32>
    %8 = arith.addf %3, %7 : vector<16x128xf32>
    %9 = arith.truncf %8 : vector<16x128xf32> to vector<16x128xbf16>
    %c0_10 = arith.constant 0 : index
    %c0_11 = arith.constant 0 : index
    %c0_12 = arith.constant 0 : index
    %10 = vector.load %arg6[%c0_10, %c0_11, %c0_12] : memref<1x16x128xbf16, #tpu.memory_space<vmem>>, vector<1x16x128xbf16>
    %11 = vector.shape_cast %10 : vector<1x16x128xbf16> to vector<16x128xbf16>
    %12 = vector.shape_cast %9 : vector<16x128xbf16> to vector<1x16x128xbf16>
    tpu.vector_store %arg6[%c0_10, %c0_11, %c0_12], %12 {strides = array<i32>} : memref<1x16x128xbf16, #tpu.memory_space<vmem>>, vector<1x16x128xbf16>,
    return
  }
  func.func @transform_0(%arg0: i32, %arg1: i32) -> (i32, i32, i32) {
    %c0_i32 = arith.constant 0 : i32
    %c0_i32_0 = arith.constant 0 : i32
    return %arg0, %c0_i32, %arg1 : i32, i32, i32
  }
  func.func @transform_1(%arg0: i32, %arg1: i32) -> (i32, i32, i32) {
    %c0_i32 = arith.constant 0 : i32
    %c0_i32_0 = arith.constant 0 : i32
    return %arg0, %c0_i32, %arg1 : i32, i32, i32
  }
  func.func @transform_2(%arg0: i32, %arg1: i32) -> (i32, i32) {
    %c0_i32 = arith.constant 0 : i32
    %c0_i32_0 = arith.constant 0 : i32
    %c0_i32_1 = arith.constant 0 : i32
    return %c0_i32, %c0_i32_0 : i32, i32
  }
  func.func @transform_3(%arg0: i32, %arg1: i32) -> (i32, i32) {
    %c0_i32 = arith.constant 0 : i32
    %c0_i32_0 = arith.constant 0 : i32
    %c0_i32_1 = arith.constant 0 : i32
    return %c0_i32, %c0_i32_0 : i32, i32
  }
  func.func @transform_4(%arg0: i32, %arg1: i32) -> (i32, i32, i32) {
    %c0_i32 = arith.constant 0 : i32
    %c0_i32_0 = arith.constant 0 : i32
    return %arg0, %c0_i32, %arg1 : i32, i32, i32
  }
}

</mosaic_0001>

<llo_original>
// kernel: tpu_custom_call.1
$region0: #{tpu_custom_call.1}
  #allocation0 [shape = 'u32[]', space=smem, size = 0x4, offset = 0x4, fixed_abs, tag = 'smem constant byte address 0x4 - core index']
  #allocation1 [shape = 'u32[144,128]{1,0:T(1,128)}', space=vmem, size = 0x12000, scoped, tag = 'internal scratch']
  %s0 = inlined_call_operand.hbm [shape: bf16[1,16,256], index: 0, kind: input, shape index: {}]
  %s1 = inlined_call_operand.hbm [shape: bf16[1,16,256], index: 1, kind: input, shape index: {}]
  %s2 = inlined_call_operand.hbm [shape: bf16[16,16], index: 2, kind: input, shape index: {}]
  %s3 = inlined_call_operand.vmem [shape: bf16[16,16], index: 3, kind: input, shape index: {}]
  %s4 = inlined_call_operand.hbm [shape: bf16[1,16,256], index: 4, kind: output, shape index: {}]
  %s5 = sld [smem:[#allocation0]]
  $region61: #{tpu_custom_call.1} parent=0
    _
  %s7 = ssub.s32 1, %s5
  %s8 = scalar_select 0, %s7, %s5
  $region1: #{tpu_custom_call.1} parent=0
    #allocation2 [shape = 'u8[8192]{0}', space=vmem, size = 0x2000, scoped, tag = 'input window, operand 0']
    #allocation3 [shape = 's32[2]{0}', space=sflag, size = 0x8, scoped, tag = 'scoped memory for tpu_custom_call.1']
    #allocation4 [shape = 's32[2]{0}', space=sflag, size = 0x8, scoped, tag = 'scoped memory for tpu_custom_call.1']
    #allocation5 [shape = 'u8[8192]{0}', space=vmem, size = 0x2000, scoped, tag = 'input window, operand 1']
    #allocation6 [shape = 's32[2]{0}', space=sflag, size = 0x8, scoped, tag = 'scoped memory for tpu_custom_call.1']
    #allocation7 [shape = 'u8[4096]{0}', space=vmem, size = 0x1000, scoped, tag = 'input window, operand 2, single buffered']
    #allocation8 [shape = 'u8[8192]{0}', space=vmem, size = 0x2000, scoped, tag = 'output window, operand 0']
    %9 = vsyncpa [#allocation3], 0
    %s10 = scalar_lea.sflag [#allocation3], 1
    %11 = vsyncpa %s10, 0
    %12 = vsyncpa [#allocation6], 0
    %s13 = scalar_lea.sflag [#allocation6], 1
    %14 = vsyncpa %s13, 0
    %15 = vsyncpa [#allocation4], 0
    %s16 = scalar_lea.sflag [#allocation4], 1
    %17 = vsyncpa %s16, 0
    loop: start=0, step=1, limit=4
    $region2: #{tpu_custom_call.1} parent=1 // loop_pre_header
      _
    $region3: #{tpu_custom_call.1} parent=1 // loop_header
      %s19 = sphi 0, %s23
      %p20 = scmp.ge.s32.totalorder %s19, 4
      %s26 = sphi 0, %s38
      %s27 = sphi 0, %s34
      %s28 = sphi 0, %s26
      %s29 = sphi 0, %s27
      %s30 = sphi 0, %s28
      %s31 = sphi 0, %s29
      %s43 = sphi 0, %s45
      %s46 = sphi 0, %s43
      %s47 = sphi 0, %s46
      %s63 = sphi 0, %s47
      %s71 = sphi 0, %s73
      %s74 = sphi 0, %s71
      %s75 = sphi 0, %s74
      %s91 = sphi 0, %s75
      %s95 = sphi 0, %s95
      %s97 = sphi 0, %s95
      %s98 = sphi 0, %s97
      %s112 = sphi 0, %s98
      %s116 = sphi 0, %s116
      %s118 = sphi 0, %s116
      %s119 = sphi 0, %s118
      %s133 = sphi 0, %s119
      %s141 = sphi 0, %s143
      %s144 = sphi 0, %s141
      %s145 = sphi 0, %s144
      %s161 = sphi 0, %s145
    $region4: #{tpu_custom_call.1} parent=1 // loop_header_branch
      %22 = sbr.rel (%p20) target = $region8
    $region5: #{tpu_custom_call.1} parent=1 // loop_body
      %s24 = ssub.s32 %s19, 1
      %s25 = ssub.s32 %s19, 2
      %s32 = sadd.s32 1, %s27
      %p33 = scmp.ge.s32.totalorder %s32, 2
      %s34 = scalar_select %p33, 0, %s32
      %s35 = sadd.s32 1, %s26
      %s36 = scalar_select %p33, %s35, %s26
      %p37 = scmp.ge.s32.totalorder %s36, 1
      %s38 = scalar_select %p37, 0, %s36
      %s39 = ssub.s32 %s26, %s38
      %s40 = ssub.s32 %s27, %s34
      %s41 = sor.u32 %s39, %s40
      %p42 = scmp.eq.s32.totalorder %s41, 0
      %s44 = sadd.s32 %s43, 1
      %s45 = scalar_select %p42, %s43, %s44
      %p48 = pneg %p42
      %p49 = scmp.eq.s32.totalorder %s19, 1
      %p50 = por %p48, %p49
      %p51 = scmp.ne.s32.totalorder %s43, %s46
      %p52 = scmp.eq.s32.totalorder %s19, 0
      %p53 = por %p51, %p52
      %p54 = scmp.ne.s32.totalorder %s43, %s46
      %p55 = scmp.eq.s32.totalorder %s24, 1
      %p56 = por %p54, %p55
      %p57 = scmp.ne.s32.totalorder %s46, %s47
      %p58 = scmp.eq.s32.totalorder %s24, 0
      %p59 = por %p57, %p58
      %p60 = scmp.ne.s32.totalorder %s46, %s47
      %p61 = scmp.eq.s32.totalorder %s25, 1
      %p62 = por %p60, %p61
      %p64 = scmp.ne.s32.totalorder %s47, %s63
      %p65 = scmp.eq.s32.totalorder %s25, 0
      %p66 = por %p64, %p65
      %s67 = ssub.s32 %s26, %s38
      %s68 = ssub.s32 %s27, %s34
      %s69 = sor.u32 %s67, %s68
      %p70 = scmp.eq.s32.totalorder %s69, 0
      %s72 = sadd.s32 %s71, 1
      %s73 = scalar_select %p70, %s71, %s72
      %p76 = pneg %p70
      %p77 = scmp.eq.s32.totalorder %s19, 1
      %p78 = por %p76, %p77
      %p79 = scmp.ne.s32.totalorder %s71, %s74
      %p80 = scmp.eq.s32.totalorder %s19, 0
      %p81 = por %p79, %p80
      %p82 = scmp.ne.s32.totalorder %s71, %s74
      %p83 = scmp.eq.s32.totalorder %s24, 1
      %p84 = por %p82, %p83
      %p85 = scmp.ne.s32.totalorder %s74, %s75
      %p86 = scmp.eq.s32.totalorder %s24, 0
      %p87 = por %p85, %p86
      %p88 = scmp.ne.s32.totalorder %s74, %s75
      %p89 = scmp.eq.s32.totalorder %s25, 1
      %p90 = por %p88, %p89
      %p92 = scmp.ne.s32.totalorder %s75, %s91
      %p93 = scmp.eq.s32.totalorder %s25, 0
      %p94 = por %p92, %p93
      %s96 = sadd.s32 %s95, 1
      %p99 = scmp.eq.s32.totalorder %s19, 1
      %p100 = scmp.ne.s32.totalorder %s95, %s97
      %p101 = scmp.eq.s32.totalorder %s19, 0
      %p102 = por %p100, %p101
      %p103 = scmp.ne.s32.totalorder %s95, %s97
      %p104 = scmp.eq.s32.totalorder %s24, 1
      %p105 = por %p103, %p104
      %p106 = scmp.ne.s32.totalorder %s97, %s98
      %p107 = scmp.eq.s32.totalorder %s24, 0
      %p108 = por %p106, %p107
      %p109 = scmp.ne.s32.totalorder %s97, %s98
      %p110 = scmp.eq.s32.totalorder %s25, 1
      %p111 = por %p109, %p110
      %p113 = scmp.ne.s32.totalorder %s98, %s112
      %p114 = scmp.eq.s32.totalorder %s25, 0
      %p115 = por %p113, %p114
      %s117 = sadd.s32 %s116, 1
      %p120 = scmp.eq.s32.totalorder %s19, 1
      %p121 = scmp.ne.s32.totalorder %s116, %s118
      %p122 = scmp.eq.s32.totalorder %s19, 0
      %p123 = por %p121, %p122
      %p124 = scmp.ne.s32.totalorder %s116, %s118
      %p125 = scmp.eq.s32.totalorder %s24, 1
      %p126 = por %p124, %p125
      %p127 = scmp.ne.s32.totalorder %s118, %s119
      %p128 = scmp.eq.s32.totalorder %s24, 0
      %p129 = por %p127, %p128
      %p130 = scmp.ne.s32.totalorder %s118, %s119
      %p131 = scmp.eq.s32.totalorder %s25, 1
      %p132 = por %p130, %p131
      %p134 = scmp.ne.s32.totalorder %s119, %s133
      %p135 = scmp.eq.s32.totalorder %s25, 0
      %p136 = por %p134, %p135
      %s137 = ssub.s32 %s26, %s38
      %s138 = ssub.s32 %s27, %s34
      %s139 = sor.u32 %s137, %s138
      %p140 = scmp.eq.s32.totalorder %s139, 0
      %s142 = sadd.s32 %s141, 1
      %s143 = scalar_select %p140, %s141, %s142
      %p146 = pneg %p140
      %p147 = scmp.eq.s32.totalorder %s19, 1
      %p148 = por %p146, %p147
      %p149 = scmp.ne.s32.totalorder %s141, %s144
      %p150 = scmp.eq.s32.totalorder %s19, 0
      %p151 = por %p149, %p150
      %p152 = scmp.ne.s32.totalorder %s141, %s144
      %p153 = scmp.eq.s32.totalorder %s24, 1
      %p154 = por %p152, %p153
      %p155 = scmp.ne.s32.totalorder %s144, %s145
      %p156 = scmp.eq.s32.totalorder %s24, 0
      %p157 = por %p155, %p156
      %p158 = scmp.ne.s32.totalorder %s144, %s145
      %p159 = scmp.eq.s32.totalorder %s25, 1
      %p160 = por %p158, %p159
      %p162 = scmp.ne.s32.totalorder %s145, %s161
      %p163 = scmp.eq.s32.totalorder %s25, 0
      %p164 = por %p162, %p163
      %p165 = scmp.le.s32.totalorder 1, %s19
      %p166 = scmp.lt.s32.totalorder %s19, 3
      %p167 = pnand %p165, %p166
      %p168 = pneg %p167
      // Predicated region
      $region9: #{tpu_custom_call.1} parent=5 // pred_check
        _
      $region10: #{tpu_custom_call.1} parent=5 // pred_check_branch
        %170 = sbr.rel (%p167) target = $region12
      $region11: #{tpu_custom_call.1} parent=5 // pred_region
        %s171 = ssub.s32 %s19, 1
        // Predicated region
        $region13: #{tpu_custom_call.1} parent=11 // pred_check
          %p172 = pneg %p108
        $region14: #{tpu_custom_call.1} parent=11 // pred_check_branch
          %174 = sbr.rel (%p172) target = $region16
        $region15: #{tpu_custom_call.1} parent=11 // pred_region
          %s176 = ssub.s32 128, 128
          %177 = vsyncadd [#allocation6], %s176
          %s178 = sshll.u32 [#allocation7], 4
          %s179 = int_to_ptr.vmem [resolvable:$true] %s178
          %184 = dma.hbm_to_vmem [thread:$0]  %s2, 128, %s179, [#allocation6], 64, 64, 4
        $region16: #{tpu_custom_call.1} parent=11 // pred_fallthru
          _
        // Predicated region
        $region17: #{tpu_custom_call.1} parent=11 // pred_check
          %p185 = pneg %p129
        $region18: #{tpu_custom_call.1} parent=11 // pred_check_branch
          %187 = sbr.rel (%p185) target = $region20
        $region19: #{tpu_custom_call.1} parent=11 // pred_region
          _
        $region20: #{tpu_custom_call.1} parent=11 // pred_fallthru
          _
      $region12: #{tpu_custom_call.1} parent=5 // pred_fallthru
        _
      %p188 = scmp.lt.s32.totalorder %s19, 2
      // Predicated region
      $region21: #{tpu_custom_call.1} parent=5 // pred_check
        %p189 = pneg %p188
      $region22: #{tpu_custom_call.1} parent=5 // pred_check_branch
        %191 = sbr.rel (%p189) target = $region24
      $region23: #{tpu_custom_call.1} parent=5 // pred_region
        // Predicated region
        $region25: #{tpu_custom_call.1} parent=23 // pred_check
          %p192 = pneg %p53
        $region26: #{tpu_custom_call.1} parent=23 // pred_check_branch
          %194 = sbr.rel (%p192) target = $region28
        $region27: #{tpu_custom_call.1} parent=23 // pred_region
          %s195 = sand.u32 %s43, 1
          %s196 = scalar_lea.sflag [#allocation3], %s195
          %s197 = sand.u32 %s43, 1
          %s198 = smul.addr %s197, 8
          %s199 = scalar_lea.vmem [#allocation2], %s198
          %s201 = ssub.s32 128, 128
          %202 = vsyncadd %s196, %s201
          %s203 = smul.addr %s26, 4
          %s204 = sadd.s32 %s27, %s203
          %s205 = smul.addr %s204, 64
          %s206 = scalar_lea.hbm %s0, %s205
          %s207 = sshll.u32 %s199, 4
          %s208 = int_to_ptr.vmem [resolvable:$true] %s207
          %213 = dma.hbm_to_vmem [thread:$0]  %s206, 128, %s208, %s196, 128, 64, 4
        $region28: #{tpu_custom_call.1} parent=23 // pred_fallthru
          _
        // Predicated region
        $region29: #{tpu_custom_call.1} parent=23 // pred_check
          %p214 = pneg %p81
        $region30: #{tpu_custom_call.1} parent=23 // pred_check_branch
          %216 = sbr.rel (%p214) target = $region32
        $region31: #{tpu_custom_call.1} parent=23 // pred_region
          %s217 = sand.u32 %s19, 1
          %s218 = scalar_lea.sflag [#allocation6], %s217
          %s219 = sand.u32 %s71, 1
          %s220 = smul.addr %s219, 8
          %s221 = scalar_lea.vmem [#allocation5], %s220
          %s223 = ssub.s32 128, 128
          %224 = vsyncadd %s218, %s223
          %s225 = smul.addr %s26, 4
          %s226 = sadd.s32 %s27, %s225
          %s227 = smul.addr %s226, 64
          %s228 = scalar_lea.hbm %s1, %s227
          %s229 = sshll.u32 %s221, 4
          %s230 = int_to_ptr.vmem [resolvable:$true] %s229
          %235 = dma.hbm_to_vmem [thread:$0]  %s228, 128, %s230, %s218, 128, 64, 4
        $region32: #{tpu_custom_call.1} parent=23 // pred_fallthru
          _
      $region24: #{tpu_custom_call.1} parent=5 // pred_fallthru
        _
      %p236 = scmp.le.s32.totalorder 1, %s19
      %p237 = scmp.lt.s32.totalorder %s19, 3
      %p238 = pnand %p236, %p237
      %p239 = pneg %p238
      // Predicated region
      $region33: #{tpu_custom_call.1} parent=5 // pred_check
        _
      $region34: #{tpu_custom_call.1} parent=5 // pred_check_branch
        %241 = sbr.rel (%p238) target = $region36
      $region35: #{tpu_custom_call.1} parent=5 // pred_region
        %s242 = ssub.s32 %s19, 1
        %s243 = sand.u32 %s46, 1
        %s244 = scalar_lea.sflag [#allocation3], %s243
        %s245 = sand.u32 %s46, 1
        %s246 = smul.addr %s245, 8
        %s247 = scalar_lea.vmem [#allocation2], %s246
        // Predicated region
        $region37: #{tpu_custom_call.1} parent=35 // pred_check
          %p248 = pneg %p59
        $region38: #{tpu_custom_call.1} parent=35 // pred_check_branch
          %250 = sbr.rel (%p248) target = $region40
        $region39: #{tpu_custom_call.1} parent=35 // pred_region
          %251 = dma.done %s244, 128
        $region40: #{tpu_custom_call.1} parent=35 // pred_fallthru
          _
        %s252 = sand.u32 %s24, 1
        %s253 = scalar_lea.sflag [#allocation6], %s252
        %s254 = sand.u32 %s74, 1
        %s255 = smul.addr %s254, 8
        %s256 = scalar_lea.vmem [#allocation5], %s255
        // Predicated region
        $region41: #{tpu_custom_call.1} parent=35 // pred_check
          %p257 = pneg %p87
        $region42: #{tpu_custom_call.1} parent=35 // pred_check_branch
          %259 = sbr.rel (%p257) target = $region44
        $region43: #{tpu_custom_call.1} parent=35 // pred_region
          %260 = dma.done %s253, 128
        $region44: #{tpu_custom_call.1} parent=35 // pred_fallthru
          _
        // Predicated region
        $region45: #{tpu_custom_call.1} parent=35 // pred_check
          %p261 = pneg %p108
        $region46: #{tpu_custom_call.1} parent=35 // pred_check_branch
          %263 = sbr.rel (%p261) target = $region48
        $region47: #{tpu_custom_call.1} parent=35 // pred_region
          %264 = dma.done [#allocation6], 128
        $region48: #{tpu_custom_call.1} parent=35 // pred_fallthru
          _
        %s265 = sand.u32 %s46, 1
        %s266 = scalar_lea.sflag [#allocation3], %s265
        %s267 = sand.u32 %s46, 1
        %s268 = smul.addr %s267, 8
        %s269 = scalar_lea.vmem [#allocation2], %s268
        %p270 = pneg %p59
        %p271 = pneg %p56
        %s272 = sand.u32 %s24, 1
        %s273 = scalar_lea.sflag [#allocation6], %s272
        %s274 = sand.u32 %s74, 1
        %s275 = smul.addr %s274, 8
        %s276 = scalar_lea.vmem [#allocation5], %s275
        %p277 = pneg %p87
        %p278 = pneg %p84
        %p279 = pneg %p108
        %p280 = pneg %p105
        %p281 = pneg %p129
        %p282 = pneg %p126
        %p283 = pneg %p157
        %p284 = pneg %p154
        %s285 = sand.u32 %s144, 1
        %s286 = scalar_lea.sflag [#allocation4], %s285
        %s287 = sand.u32 %s144, 1
        %s288 = smul.addr %s287, 8
        %s289 = scalar_lea.vmem [#allocation8], %s288
        %v291 = vld [vmem:[#allocation7] sm:$0xf]
        %v292 = vld [vmem:[#allocation7 + $0x4] sm:$0xf]
        %v293 = vld [vmem:[%s247] sm:$0xf]
        %v294 = vld [vmem:[%s247 + $0x4] sm:$0xf]
        %v295 = vld [vmem:[%s3] sm:$0xf]
        %v296 = vld [vmem:[%s3 + $0x4] sm:$0xf]
        %v297 = vld [vmem:[%s256] sm:$0xf]
        %v298 = vld [vmem:[%s256 + $0x4] sm:$0xf]
        %v301 = vunpack.c.l.b16 %v295
        %v302 = vunpack.c.l.b16 %v296
        %v303 = vpack.c.b16 %v302, %v301
        %v306 = vunpack.c.l.b16 %v297
        %v307 = vunpack.c.l.b16 %v298
        %v308 = vpack.c.b16 %v307, %v306
        %vm310 = vcmask 130048
        %v312 = vsel %vm310, %v303, 0
        %314 = vmatprep.subr.bf16.mxu0 0
        %315 = vmatpush1.bf16.msra.mxu0 %v308
        %316 = vmatprep.subr.bf16.mxu0 0
        %317 = vmatpush1.bf16.msra.mxu0 0
        %318 = vmatprep.subr.bf16.mxu0 0
        %319 = vmatpush1.bf16.msra.mxu0 0
        %320 = vmatprep.subr.bf16.mxu0 0
        %321 = vmatpush1.bf16.msra.mxu0 0
        %322 = vmatprep.subr.bf16.mxu0 0
        %323 = vmatpush1.bf16.msra.mxu0 0
        %324 = vmatprep.subr.bf16.mxu0 0
        %325 = vmatpush1.bf16.msra.mxu0 0
        %326 = vmatprep.subr.bf16.mxu0 0
        %327 = vmatpush1.bf16.msra.mxu0 0
        %328 = vmatprep.subr.bf16.mxu0 0
        %329 = vmatpush1.bf16.msra.mxu0 0
        %330 = vmatprep.subr.bf16.mxu0 0
        %331 = vmatpush1.bf16.msra.mxu0 0
        %332 = vmatprep.subr.bf16.mxu0 0
        %333 = vmatpush1.bf16.msra.mxu0 0
        %334 = vmatprep.subr.bf16.mxu0 0
        %335 = vmatpush1.bf16.msra.mxu0 0
        %336 = vmatprep.subr.bf16.mxu0 0
        %337 = vmatpush1.bf16.msra.mxu0 0
        %338 = vmatprep.subr.bf16.mxu0 0
        %339 = vmatpush1.bf16.msra.mxu0 0
        %340 = vmatprep.subr.bf16.mxu0 0
        %341 = vmatpush1.bf16.msra.mxu0 0
        %342 = vmatprep.subr.bf16.mxu0 0
        %343 = vmatpush1.bf16.msra.mxu0 0
        %344 = vmatprep.subr.bf16.mxu0 0
        %345 = vmatpush1.bf16.msra.mxu0 0
        %346 = vmatprep.mubr.bf16.mxu0 0
        %347 = vmatmul.mubr.bf16.gmra.mrb[0].mxu0 %v312
        %v348 = vpop.f32.mrb[0].mxu0
        %v349 = vadd.f32 0.0, %v348
        %v350 = vpop.f32.mrb[0].mxu0
        %v351 = vpop.f32.mrb[0].mxu0
        %v352 = vadd.f32 0.0, %v351
        %v353 = vpop.f32.mrb[0].mxu0
        %354 = vdwg.mxu0
        %v357 = vunpack.c.l.b16 %v291
        %v358 = vunpack.c.l.b16 %v292
        %v359 = vpack.c.b16 %v358, %v357
        %v362 = vunpack.c.l.b16 %v293
        %v363 = vunpack.c.l.b16 %v294
        %v364 = vpack.c.b16 %v363, %v362
        %v367 = vsel %vm310, %v359, 0
        %369 = vmatprep.subr.bf16.mxu0 0
        %370 = vmatpush1.bf16.msra.mxu0 %v364
        %371 = vmatprep.subr.bf16.mxu0 0
        %372 = vmatpush1.bf16.msra.mxu0 0
        %373 = vmatprep.subr.bf16.mxu0 0
        %374 = vmatpush1.bf16.msra.mxu0 0
        %375 = vmatprep.subr.bf16.mxu0 0
        %376 = vmatpush1.bf16.msra.mxu0 0
        %377 = vmatprep.subr.bf16.mxu0 0
        %378 = vmatpush1.bf16.msra.mxu0 0
        %379 = vmatprep.subr.bf16.mxu0 0
        %380 = vmatpush1.bf16.msra.mxu0 0
        %381 = vmatprep.subr.bf16.mxu0 0
        %382 = vmatpush1.bf16.msra.mxu0 0
        %383 = vmatprep.subr.bf16.mxu0 0
        %384 = vmatpush1.bf16.msra.mxu0 0
        %385 = vmatprep.subr.bf16.mxu0 0
        %386 = vmatpush1.bf16.msra.mxu0 0
        %387 = vmatprep.subr.bf16.mxu0 0
        %388 = vmatpush1.bf16.msra.mxu0 0
        %389 = vmatprep.subr.bf16.mxu0 0
        %390 = vmatpush1.bf16.msra.mxu0 0
        %391 = vmatprep.subr.bf16.mxu0 0
        %392 = vmatpush1.bf16.msra.mxu0 0
        %393 = vmatprep.subr.bf16.mxu0 0
        %394 = vmatpush1.bf16.msra.mxu0 0
        %395 = vmatprep.subr.bf16.mxu0 0
        %396 = vmatpush1.bf16.msra.mxu0 0
        %397 = vmatprep.subr.bf16.mxu0 0
        %398 = vmatpush1.bf16.msra.mxu0 0
        %399 = vmatprep.subr.bf16.mxu0 0
        %400 = vmatpush1.bf16.msra.mxu0 0
        %401 = vmatprep.mubr.bf16.mxu0 0
        %402 = vmatmul.mubr.bf16.gmra.mrb[0].mxu0 %v367
        %v403 = vpop.f32.mrb[0].mxu0
        %v404 = vadd.f32 %v349, %v403
        %v405 = vpop.f32.mrb[0].mxu0
        %v406 = vpop.f32.mrb[0].mxu0
        %v407 = vadd.f32 %v352, %v406
        %v408 = vpop.f32.mrb[0].mxu0
        %409 = vdwg.mxu0
        %v410 = vpack.c.bf16 %v407, %v404
        %v412 = vunpack.c.l.b16 %v410
        %v413 = vunpack.c.h.b16 %v410
        %v414 = vpack.c.b16 %v412, %v412
        %v415 = vpack.c.b16 %v413, %v413
        %418 = vst [vmem:[%s289] sm:$0xf] %v414
        %419 = vst [vmem:[%s289 + $0x4] sm:$0xf] %v415
        %s420 = sand.u32 %s144, 1
        %s421 = scalar_lea.sflag [#allocation4], %s420
        %s422 = sand.u32 %s144, 1
        %s423 = smul.addr %s422, 8
        %s424 = scalar_lea.vmem [#allocation8], %s423
        // Predicated region
        $region49: #{tpu_custom_call.1} parent=35 // pred_check
          %p425 = pneg %p154
        $region50: #{tpu_custom_call.1} parent=35 // pred_check_branch
          %427 = sbr.rel (%p425) target = $region52
        $region51: #{tpu_custom_call.1} parent=35 // pred_region
          %s429 = ssub.s32 128, 128
          %430 = vsyncadd %s421, %s429
          %s431 = smul.addr %s28, 4
          %s432 = sadd.s32 %s29, %s431
          %s433 = smul.addr %s432, 64
          %s434 = scalar_lea.hbm %s4, %s433
          %s435 = sshll.u32 %s424, 4
          %s436 = int_to_ptr.vmem [resolvable:$true] %s435
          %441 = dma.vmem_to_hbm [thread:$0]  %s436, 128, %s434, %s421, 64, 128, 4
        $region52: #{tpu_custom_call.1} parent=35 // pred_fallthru
          _
      $region36: #{tpu_custom_call.1} parent=5 // pred_fallthru
        _
      %p442 = scmp.le.s32.totalorder 2, %s19
      // Predicated region
      $region53: #{tpu_custom_call.1} parent=5 // pred_check
        %p443 = pneg %p442
      $region54: #{tpu_custom_call.1} parent=5 // pred_check_branch
        %445 = sbr.rel (%p443) target = $region56
      $region55: #{tpu_custom_call.1} parent=5 // pred_region
        %s446 = ssub.s32 %s19, 2
        // Predicated region
        $region57: #{tpu_custom_call.1} parent=55 // pred_check
          %p447 = pneg %p160
        $region58: #{tpu_custom_call.1} parent=55 // pred_check_branch
          %449 = sbr.rel (%p447) target = $region60
        $region59: #{tpu_custom_call.1} parent=55 // pred_region
          %s450 = sand.u32 %s145, 1
          %s451 = scalar_lea.sflag [#allocation4], %s450
          %s452 = sand.u32 %s145, 1
          %s453 = smul.addr %s452, 8
          %s454 = scalar_lea.vmem [#allocation8], %s453
          %455 = dma.done %s451, 128
        $region60: #{tpu_custom_call.1} parent=55 // pred_fallthru
          _
      $region56: #{tpu_custom_call.1} parent=5 // pred_fallthru
        _
    $region6: #{tpu_custom_call.1} parent=1 // loop_footer
      %s23 = sadd.s32 1, %s19
    $region7: #{tpu_custom_call.1} parent=1 // loop_footer_branch
      %18 = sbr.rel target = $region3
    $region8: #{tpu_custom_call.1} parent=1 // loop_exit
      _
    %456 = vsyncpa [#allocation3], 1
    %s457 = scalar_lea.sflag [#allocation3], 1
    %458 = vsyncpa %s457, 1
    %459 = vsyncpa [#allocation6], 1
    %s460 = scalar_lea.sflag [#allocation6], 1
    %461 = vsyncpa %s460, 1
    %462 = vsyncpa [#allocation4], 1
    %s463 = scalar_lea.sflag [#allocation4], 1
    %464 = vsyncpa %s463, 1

</llo_original>
